<compile_context>
chip_gen: v5e
topology: v5e:2x2
jax: 0.10.0
libtpu: 0.0.40
codegen_flags: <defaults>
</compile_context>

<pallas_src>
import functools
import math

import jax
import jax.numpy as jnp
from jax import lax
from jax.experimental import pallas as pl
from jax.experimental.pallas import tpu as pltpu

_EPS = 1e-5       # torch.nn.LayerNorm default eps
_LANE = 128
_SUBLANE = 8


def _round_up(x, m):
    return (x + m - 1) // m * m


def _vmem_capacity_bytes():
    """Per-core VMEM capacity; conservative (v7x-sized) fallback if unavailable."""
    try:
        cap = getattr(pltpu.get_tpu_info(), "vmem_capacity_bytes", None)
        if cap:
            return int(cap)
    except Exception:
        pass
    return 64 * 1024 * 1024


def _const_spec(shape, index_map):
    """BlockSpec for a grid-constant block; single-buffered when supported."""
    try:
        return pl.BlockSpec(shape, index_map, pipeline_mode=pl.Buffered(1))
    except Exception:
        return pl.BlockSpec(shape, index_map)


def _gelu_exact(h):
    # torch.nn.GELU() default (exact erf form).  erf via Abramowitz-Stegun 7.1.26
    # (|abs err| < 1.5e-7): one EUP exp + a short VPU polynomial; avoids relying
    # on a native erf lowering in Mosaic.
    z = h * (1.0 / math.sqrt(2.0))
    az = jnp.abs(z)
    t = 1.0 / (1.0 + 0.3275911 * az)
    poly = t * (0.254829592 + t * (-0.284496736 + t * (1.421413741
           + t * (-1.453152027 + t * 1.061405429))))
    erf_abs = 1.0 - poly * jnp.exp(-az * az)
    erf = jnp.where(z < 0.0, -erf_abs, erf_abs)
    return 0.5 * h * (1.0 + erf)


def _layernorm_stats(v, true_count):
    # Single-pass E[x], E[x^2] over the full (zero-padded) lane extent using the
    # TRUE feature count: padded columns are zero so the sums are exact.
    # (A two-pass variance would need a lane mask because (x - mu) is nonzero in
    # padded lanes; single-pass cancellation is fine at embedding scales.)
    inv = 1.0 / float(true_count)
    mu = jnp.sum(v, axis=-1, keepdims=True) * inv
    ex2 = jnp.sum(v * v, axis=-1, keepdims=True) * inv
    var = jnp.maximum(ex2 - mu * mu, 0.0)
    return mu, lax.rsqrt(var + _EPS)


# --------------------------------------------------------------------------- #
# Kernels
# --------------------------------------------------------------------------- #
def _mlp_proj_kernel_resident(x_ref, w1_ref, wb1_ref, w2_ref, wb2_ref, g2_ref,
                              b2_ref, o_ref, *, c_in, c_out, compute_dtype):
    # LayerNorm(in_dim) -- affine already folded into W1/wb1 at prep time.
    x = x_ref[...].astype(jnp.float32)
    mu, rstd = _layernorm_stats(x, c_in)
    xn = (x - mu) * rstd

    # Linear(in_dim, in_dim): compute-dtype operands, f32 MXU accumulation.
    h = jnp.dot(xn.astype(compute_dtype), w1_ref[...],
                preferred_element_type=jnp.float32) + wb1_ref[...]
    h = _gelu_exact(h)

    # Linear(in_dim, out_dim)
    y = jnp.dot(h.astype(compute_dtype), w2_ref[...],
                preferred_element_type=jnp.float32) + wb2_ref[...]

    # LayerNorm(out_dim)
    mu2, rstd2 = _layernorm_stats(y, c_out)
    yn = (y - mu2) * rstd2
    o_ref[...] = (yn * g2_ref[...] + b2_ref[...]).astype(o_ref.dtype)


def _mlp_proj_kernel_streamed(x_ref, w1_ref, wb1_ref, w2_ref, wb2_ref, g2_ref,
                              b2_ref, o_ref, h_ref, *, c_in, c_out, tn,
                              compute_dtype):
    # Grid: (row blocks, W2 column tiles).  Output block is VMEM-resident across
    # the column sweep (same block index for all j), written back once per row
    # block.  W2 tiles stream through the default double-buffered pipeline.
    j = pl.program_id(1)

    @pl.when(j == 0)
    def _():
        # LN1 + Linear1 + GELU once per row block, staged in a VMEM scratch.
        x = x_ref[...].astype(jnp.float32)
        mu, rstd = _layernorm_stats(x, c_in)
        xn = (x - mu) * rstd
        h = jnp.dot(xn.astype(compute_dtype), w1_ref[...],
                    preferred_element_type=jnp.float32) + wb1_ref[...]
        h_ref[...] = _gelu_exact(h).astype(compute_dtype)

    # Column tile j of Linear2 into the resident output block.
    y = jnp.dot(h_ref[...], w2_ref[...],
                preferred_element_type=jnp.float32) + wb2_ref[...]
    col0 = pl.multiple_of(j * tn, _LANE)
    o_ref[:, pl.ds(col0, tn)] = y.astype(o_ref.dtype)

    @pl.when(j == pl.num_programs(1) - 1)
    def _():
        # LayerNorm(out_dim) over the full row, still in VMEM.
        yf = o_ref[...].astype(jnp.float32)
        mu2, rstd2 = _layernorm_stats(yf, c_out)
        yn = (yf - mu2) * rstd2
        o_ref[...] = (yn * g2_ref[...] + b2_ref[...]).astype(o_ref.dtype)


# --------------------------------------------------------------------------- #
# Host-side wrapper
# --------------------------------------------------------------------------- #
def prepare_params(params, *, compute_dtype=jnp.bfloat16):
    """One-time weight prep (call OUTSIDE the per-step path): pad feature dims to
    lane multiples, cast big matrices to the compute dtype, and fold the LN1
    affine into Linear1 (W1' = g1[:,None]*W1, wb1' = b1 @ W1 + wb1)."""
    c_in = params["w1"].shape[0]
    c_out = params["w2"].shape[1]
    c_in_p = _round_up(c_in, _LANE)
    c_out_p = _round_up(c_out, _LANE)

    f32 = jnp.float32
    g1, b1 = params["g1"].astype(f32), params["b1"].astype(f32)
    w1, wb1 = params["w1"].astype(f32), params["wb1"].astype(f32)
    w2, wb2 = params["w2"].astype(f32), params["wb2"].astype(f32)
    g2, b2 = params["g2"].astype(f32), params["b2"].astype(f32)

    w1_f = g1[:, None] * w1
    wb1_f = b1 @ w1 + wb1

    pad_m = lambda m, r, c: jnp.pad(m, ((0, r - m.shape[0]), (0, c - m.shape[1])))
    pad_v = lambda v, c: jnp.pad(v.reshape(1, -1), ((0, 0), (0, c - v.shape[0])))

    return {
        "w1": pad_m(w1_f, c_in_p, c_in_p).astype(compute_dtype),
        "wb1": pad_v(wb1_f, c_in_p),
        "w2": pad_m(w2, c_in_p, c_out_p).astype(compute_dtype),
        "wb2": pad_v(wb2, c_out_p),
        "g2": pad_v(g2, c_out_p),
        "b2": pad_v(b2, c_out_p),
        "c_in": c_in,
        "c_out": c_out,
        "compute_dtype": jnp.dtype(compute_dtype),
    }


def mlp_proj(image_embeds, prepared, *, tm=None, tn=None):
    """image_embeds: (B, L, C_in) -> (B, L, C_out); `prepared = prepare_params(...)`."""
    B, L, c_in = image_embeds.shape
    assert c_in == prepared["c_in"], "input feature dim mismatch"
    c_out = prepared["c_out"]
    compute_dtype = prepared["compute_dtype"]
    c_in_p = prepared["w1"].shape[0]
    c_out_p = prepared["w2"].shape[1]
    N = B * L
    out_dtype = image_embeds.dtype

    # Ship activations in the (narrower) compute dtype: halves x-side HBM traffic
    # and the double-buffered x tile.  (Best when this cast fuses with the
    # producer of image_embeds under jit.)
    x_dtype = (compute_dtype
               if jnp.dtype(compute_dtype).itemsize < jnp.dtype(out_dtype).itemsize
               else out_dtype)
    x2d = image_embeds.reshape(N, c_in).astype(x_dtype)
    if c_in_p != c_in:
        # Zero-pad features to a lane multiple (keeps LN sums exact).  Rows are
        # NEVER padded: the grid uses cdiv and the ragged last row block is
        # masked on store (LN is strictly per-row, so garbage rows are harmless).
        x2d = jnp.pad(x2d, ((0, 0), (0, c_in_p - c_in)))

    w_item = jnp.dtype(compute_dtype).itemsize
    x_item = jnp.dtype(x_dtype).itemsize
    o_item = jnp.dtype(out_dtype).itemsize

    # --- generation-aware tiling / VMEM budget --------------------------------
    budget = int(0.85 * _vmem_capacity_bytes())

    tm_cap = _round_up(tm, _SUBLANE) if tm is not None else \
        (512 if budget >= 96 * 2**20 else 256)
    # Keep at least two row blocks when N allows it so the 'parallel' row axis
    # can shard across both TensorCores on v7x (harmless on single-TC chips).
    tm_eff = max(_SUBLANE, min(tm_cap, _round_up(pl.cdiv(N, 2), _SUBLANE)))

    def vmem_bytes(tm_e, tn_e, split):
        w1_b = c_in_p * c_in_p * w_item                        # single-buffered
        w2_b = (2 if split else 1) * c_in_p * tn_e * w_item    # streamed tiles double-buffer
        x_b = 2 * tm_e * c_in_p * x_item
        o_b = 2 * tm_e * c_out_p * o_item
        h_b = tm_e * c_in_p * w_item if split else 0           # GELU(h) scratch
        vec_b = 4 * (c_in_p + c_out_p) * 4
        tmp_b = 4 * tm_e * (c_in_p + c_out_p) * 4              # f32 live intermediates
        return w1_b + w2_b + x_b + o_b + h_b + vec_b + tmp_b

    # W2 column-tile width: keep W2 fully resident when it fits, otherwise
    # stream lane-multiple column tiles that divide c_out_p.
    tn_cands = [d for d in range(c_out_p, _LANE - 1, -_LANE) if c_out_p % d == 0]
    if tn is not None:
        t_req = max(_LANE, _round_up(tn, _LANE))
        tn_eff = next((d for d in tn_cands if d <= t_req), _LANE)
    else:
        tn_eff = tn_cands[0]
        for d in tn_cands:
            tn_eff = d
            if vmem_bytes(tm_eff, d, d < c_out_p) <= budget:
                break
    while vmem_bytes(tm_eff, tn_eff, tn_eff < c_out_p) > budget and tm_eff > 4 * _SUBLANE:
        tm_eff = max(_SUBLANE, _round_up(tm_eff // 2, _SUBLANE))
    # TODO(synk): if bf16 W1 alone overflows the budget (huge in_dim on v7x),
    # add a K-tiled streamed-W1 path with an f32 `h` accumulator.

    grid_m = pl.cdiv(N, tm_eff)
    split = tn_eff < c_out_p
    grid_n = c_out_p // tn_eff

    args = (x2d, prepared["w1"], prepared["wb1"], prepared["w2"],
            prepared["wb2"], prepared["g2"], prepared["b2"])

    if not split:
        grid = (grid_m,)
        in_specs = [
            pl.BlockSpec((tm_eff, c_in_p), lambda i: (i, 0)),        # x rows
            _const_spec((c_in_p, c_in_p), lambda i: (0, 0)),         # W1 (LN1-folded)
            _const_spec((1, c_in_p), lambda i: (0, 0)),              # b1' (folded)
            _const_spec((c_in_p, c_out_p), lambda i: (0, 0)),        # W2
            _const_spec((1, c_out_p), lambda i: (0, 0)),             # b2 (linear)
            _const_spec((1, c_out_p), lambda i: (0, 0)),             # ln2 gamma
            _const_spec((1, c_out_p), lambda i: (0, 0)),             # ln2 beta
        ]
        out_specs = pl.BlockSpec((tm_eff, c_out_p), lambda i: (i, 0))
        scratch_shapes = []
        dims = ("parallel",)
        kernel = functools.partial(_mlp_proj_kernel_resident, c_in=c_in,
                                   c_out=c_out, compute_dtype=compute_dtype)
    else:
        grid = (grid_m, grid_n)
        in_specs = [
            pl.BlockSpec((tm_eff, c_in_p), lambda i, j: (i, 0)),     # x rows
            _const_spec((c_in_p, c_in_p), lambda i, j: (0, 0)),      # W1 (LN1-folded)
            _const_spec((1, c_in_p), lambda i, j: (0, 0)),           # b1' (folded)
            pl.BlockSpec((c_in_p, tn_eff), lambda i, j: (0, j)),     # W2 column tile
            pl.BlockSpec((1, tn_eff), lambda i, j: (0, j)),          # b2 column tile
            _const_spec((1, c_out_p), lambda i, j: (0, 0)),          # ln2 gamma
            _const_spec((1, c_out_p), lambda i, j: (0, 0)),          # ln2 beta
        ]
        out_specs = pl.BlockSpec((tm_eff, c_out_p), lambda i, j: (i, 0))  # resident over j
        scratch_shapes = [pltpu.VMEM((tm_eff, c_in_p), compute_dtype)]     # GELU(h)
        dims = ("parallel", "arbitrary")
        kernel = functools.partial(_mlp_proj_kernel_streamed, c_in=c_in,
                                   c_out=c_out, tn=tn_eff,
                                   compute_dtype=compute_dtype)

    grid_spec = pltpu.PrefetchScalarGridSpec(
        num_scalar_prefetch=0, grid=grid, in_specs=in_specs,
        out_specs=out_specs, scratch_shapes=scratch_shapes)

    # Advisory cost estimate for XLA scheduling around the custom call.
    w2_reads = grid_m if split else 1            # streamed W2 re-read per row block
    flops = 2 * N * c_in_p * (c_in_p + c_out_p)
    bytes_accessed = int(
        x2d.size * x_item
        + prepared["w1"].size * w_item + w2_reads * prepared["w2"].size * w_item
        + 4 * (c_in_p + c_out_p) * 4
        + N * c_out_p * o_item)
    cost = pl.CostEstimate(flops=int(flops), transcendentals=int(N * c_in_p),
                           bytes_accessed=bytes_accessed)

    out2d = pl.pallas_call(
        kernel,
        out_shape=jax.ShapeDtypeStruct((N, c_out_p), out_dtype),
        grid_spec=grid_spec,
        compiler_params=pltpu.CompilerParams(
            dimension_semantics=dims, vmem_limit_bytes=budget),
        cost_estimate=cost,
    )(*args)

    if c_out_p != c_out:
        out2d = out2d[:, :c_out]
    return out2d.reshape(B, L, c_out)


# --------------------------------------------------------------------------- #
# Test harness
# --------------------------------------------------------------------------- #
def init_params(key, in_dim, out_dim, dtype=jnp.float32):
    """Synthetic parameters mirroring MLPProj.__init__ shapes.  Linear weights are
    stored as (in_features, out_features), i.e. torch's nn.Linear.weight.T."""
    k1, k2, k3, k4 = jax.random.split(key, 4)
    s1 = 1.0 / math.sqrt(in_dim)
    return {
        "g1": jnp.ones((in_dim,), dtype),
        "b1": jnp.zeros((in_dim,), dtype),
        "w1": jax.random.uniform(k1, (in_dim, in_dim), dtype, -s1, s1),
        "wb1": jax.random.uniform(k2, (in_dim,), dtype, -s1, s1),
        "w2": jax.random.uniform(k3, (in_dim, out_dim), dtype, -s1, s1),
        "wb2": jax.random.uniform(k4, (out_dim,), dtype, -s1, s1),
        "g2": jnp.ones((out_dim,), dtype),
        "b2": jnp.zeros((out_dim,), dtype),
    }


def _reference(x, p):
    """Pure-JAX f32 reference of the torch forward."""
    def ln(v, g, b):
        mu = jnp.mean(v, axis=-1, keepdims=True)
        var = jnp.mean(jnp.square(v - mu), axis=-1, keepdims=True)
        return (v - mu) * lax.rsqrt(var + _EPS) * g + b

    h = ln(x, p["g1"], p["b1"])
    h = h @ p["w1"] + p["wb1"]
    h = 0.5 * h * (1.0 + lax.erf(h / math.sqrt(2.0)))
    h = h @ p["w2"] + p["wb2"]
    return ln(h, p["g2"], p["b2"])


if __name__ == "__main__":
    key = jax.random.PRNGKey(0)
    kx, kp, kp2 = jax.random.split(key, 3)

    B, L, in_dim, out_dim = 2, 8, 32, 64
    image_embeds = jax.random.normal(kx, (B, L, in_dim), jnp.float32)
    params = init_params(kp, in_dim, out_dim)
    ref = _reference(image_embeds, params)

    # 1) default bf16-compute path (weights resident in VMEM).
    prepared_bf16 = prepare_params(params, compute_dtype=jnp.bfloat16)
    out = jax.block_until_ready(mlp_proj(image_embeds, prepared_bf16))
    assert out.shape == (B, L, out_dim)
    assert jnp.allclose(out, ref, atol=5e-2, rtol=5e-2), "bf16 path mismatch"

    # 2) f32-compute path (tighter; residual diff is dominated by the MXU f32
    #    emulation vs XLA's default dot precision, not the kernel math).
    prepared_f32 = prepare_params(params, compute_dtype=jnp.float32)
    out_f32 = jax.block_until_ready(mlp_proj(image_embeds, prepared_f32))
    assert jnp.allclose(out_f32, ref, atol=2e-2, rtol=2e-2), "f32 path mismatch"

    # 3) streamed-W2 path (forced small column tile) on a wider projector,
    #    exercising the (row, column-tile) grid + resident output block + LN2 pass.
    out_dim2 = 256
    params2 = init_params(kp2, in_dim, out_dim2)
    ref2 = _reference(image_embeds, params2)
    prepared2 = prepare_params(params2, compute_dtype=jnp.float32)
    out_stream = jax.block_until_ready(mlp_proj(image_embeds, prepared2, tn=128))
    assert out_stream.shape == (B, L, out_dim2)
    assert jnp.allclose(out_stream, ref2, atol=2e-2, rtol=2e-2), "streamed path mismatch"

    print("KERNEL_OK")
</pallas_src>

<mosaic_0001>
module attributes {stable_mosaic.version = 11 : i64} {
  func.func @_mlp_proj_kernel_resident(%arg0: i32, %arg1: memref<8x128xbf16, #tpu.memory_space<vmem>>, %arg2: memref<128x128xbf16, #tpu.memory_space<vmem>>, %arg3: memref<1x128xf32, #tpu.memory_space<vmem>>, %arg4: memref<128x128xbf16, #tpu.memory_space<vmem>>, %arg5: memref<1x128xf32, #tpu.memory_space<vmem>>, %arg6: memref<1x128xf32, #tpu.memory_space<vmem>>, %arg7: memref<1x128xf32, #tpu.memory_space<vmem>>, %arg8: memref<8x128xf32, #tpu.memory_space<vmem>>) attributes {dimension_semantics = [#tpu.dimension_semantics<parallel>], iteration_bounds = array<i64: 2>, scalar_prefetch = 0 : i64, scratch_operands = 0 : i64, tpu.core_type = #tpu.core_type<tc>, window_params = [{transform_indices = @transform_0, window_bounds = array<i64: 8, 128>}, {pipeline_mode = #tpu.pipeline_mode<synchronous>, transform_indices = @transform_1, window_bounds = array<i64: 128, 128>}, {pipeline_mode = #tpu.pipeline_mode<synchronous>, transform_indices = @transform_2, window_bounds = array<i64: 1, 128>}, {pipeline_mode = #tpu.pipeline_mode<synchronous>, transform_indices = @transform_3, window_bounds = array<i64: 128, 128>}, {pipeline_mode = #tpu.pipeline_mode<synchronous>, transform_indices = @transform_4, window_bounds = array<i64: 1, 128>}, {pipeline_mode = #tpu.pipeline_mode<synchronous>, transform_indices = @transform_5, window_bounds = array<i64: 1, 128>}, {pipeline_mode = #tpu.pipeline_mode<synchronous>, transform_indices = @transform_6, window_bounds = array<i64: 1, 128>}, {transform_indices = @transform_7, window_bounds = array<i64: 8, 128>}]} {
    %c0 = arith.constant 0 : index
    %c0_0 = arith.constant 0 : index
    %0 = vector.load %arg1[%c0, %c0_0] : memref<8x128xbf16, #tpu.memory_space<vmem>>, vector<8x128xbf16>
    %1 = arith.extf %0 : vector<8x128xbf16> to vector<8x128xf32>
    %cst = arith.constant dense<0.000000e+00> : vector<8xf32>
    %2 = vector.multi_reduction <add>, %1, %cst [1] : vector<8x128xf32> to vector<8xf32>
    %3 = vector.shape_cast %2 : vector<8xf32> to vector<8x1xf32>
    %cst_1 = arith.constant 3.125000e-02 : f32
    %4 = vector.broadcast %cst_1 : f32 to vector<8x1xf32>
    %5 = arith.mulf %3, %4 : vector<8x1xf32>
    %6 = arith.mulf %1, %1 : vector<8x128xf32>
    %cst_2 = arith.constant dense<0.000000e+00> : vector<8xf32>
    %7 = vector.multi_reduction <add>, %6, %cst_2 [1] : vector<8x128xf32> to vector<8xf32>
    %8 = vector.shape_cast %7 : vector<8xf32> to vector<8x1xf32>
    %cst_3 = arith.constant 3.125000e-02 : f32
    %9 = vector.broadcast %cst_3 : f32 to vector<8x1xf32>
    %10 = arith.mulf %8, %9 : vector<8x1xf32>
    %11 = arith.mulf %5, %5 : vector<8x1xf32>
    %12 = arith.subf %10, %11 : vector<8x1xf32>
    %cst_4 = arith.constant 0.000000e+00 : f32
    %13 = vector.broadcast %cst_4 : f32 to vector<8x1xf32>
    %14 = arith.maximumf %12, %13 : vector<8x1xf32>
    %cst_5 = arith.constant 9.99999974E-6 : f32
    %15 = vector.broadcast %cst_5 : f32 to vector<8x1xf32>
    %16 = arith.addf %14, %15 : vector<8x1xf32>
    %17 = math.rsqrt %16 : vector<8x1xf32>
    %18 = vector.broadcast %5 : vector<8x1xf32> to vector<8x128xf32>
    %19 = arith.subf %1, %18 : vector<8x128xf32>
    %20 = vector.broadcast %17 : vector<8x1xf32> to vector<8x128xf32>
    %21 = arith.mulf %19, %20 : vector<8x128xf32>
    %22 = arith.truncf %21 : vector<8x128xf32> to vector<8x128xbf16>
    %c0_6 = arith.constant 0 : index
    %c0_7 = arith.constant 0 : index
    %23 = vector.load %arg2[%c0_6, %c0_7] : memref<128x128xbf16, #tpu.memory_space<vmem>>, vector<128x128xbf16>
    %cst_8 = arith.constant dense<0.000000e+00> : vector<8x128xf32>
    %24 = tpu.matmul %22, %23, %cst_8 {dimension_numbers = #tpu.dot_dimension_numbers<[1], [0], [0], [1], [0, 0, 1, 1], [], []>} : vector<8x128xbf16>, vector<128x128xbf16>, vector<8x128xf32> -> vector<8x128xf32>
    %c0_9 = arith.constant 0 : index
    %c0_10 = arith.constant 0 : index
    %25 = vector.load %arg3[%c0_9, %c0_10] : memref<1x128xf32, #tpu.memory_space<vmem>>, vector<1x128xf32>
    %26 = vector.broadcast %25 : vector<1x128xf32> to vector<8x128xf32>
    %27 = arith.addf %24, %26 : vector<8x128xf32>
    %cst_11 = arith.constant 0.707106769 : f32
    %28 = vector.broadcast %cst_11 : f32 to vector<8x128xf32>
    %29 = arith.mulf %27, %28 : vector<8x128xf32>
    %30 = math.absf %29 : vector<8x128xf32>
    %cst_12 = arith.constant 0.327591091 : f32
    %31 = vector.broadcast %cst_12 : f32 to vector<8x128xf32>
    %32 = arith.mulf %31, %30 : vector<8x128xf32>
    %cst_13 = arith.constant 1.000000e+00 : f32
    %33 = vector.broadcast %cst_13 : f32 to vector<8x128xf32>
    %34 = arith.addf %33, %32 : vector<8x128xf32>
    %cst_14 = arith.constant 1.000000e+00 : f32
    %35 = vector.broadcast %cst_14 : f32 to vector<8x128xf32>
    %36 = arith.divf %35, %34 : vector<8x128xf32>
    %cst_15 = arith.constant 1.06140542 : f32
    %37 = vector.broadcast %cst_15 : f32 to vector<8x128xf32>
    %38 = arith.mulf %36, %37 : vector<8x128xf32>
    %cst_16 = arith.constant -1.45315206 : f32
    %39 = vector.broadcast %cst_16 : f32 to vector<8x128xf32>
    %40 = arith.addf %39, %38 : vector<8x128xf32>
    %41 = arith.mulf %36, %40 : vector<8x128xf32>
    %cst_17 = arith.constant 1.42141378 : f32
    %42 = vector.broadcast %cst_17 : f32 to vector<8x128xf32>
    %43 = arith.addf %42, %41 : vector<8x128xf32>
    %44 = arith.mulf %36, %43 : vector<8x128xf32>
    %cst_18 = arith.constant -0.284496725 : f32
    %45 = vector.broadcast %cst_18 : f32 to vector<8x128xf32>
    %46 = arith.addf %45, %44 : vector<8x128xf32>
    %47 = arith.mulf %36, %46 : vector<8x128xf32>
    %cst_19 = arith.constant 0.254829586 : f32
    %48 = vector.broadcast %cst_19 : f32 to vector<8x128xf32>
    %49 = arith.addf %48, %47 : vector<8x128xf32>
    %50 = arith.mulf %36, %49 : vector<8x128xf32>
    %cst_20 = arith.constant 0.000000e+00 : f32
    %51 = vector.broadcast %cst_20 : f32 to vector<8x128xf32>
    %52 = arith.subf %51, %30 : vector<8x128xf32>
    %53 = arith.mulf %52, %30 : vector<8x128xf32>
    %54 = math.exp %53 : vector<8x128xf32>
    %55 = arith.mulf %50, %54 : vector<8x128xf32>
    %cst_21 = arith.constant 1.000000e+00 : f32
    %56 = vector.broadcast %cst_21 : f32 to vector<8x128xf32>
    %57 = arith.subf %56, %55 : vector<8x128xf32>
    %cst_22 = arith.constant 0.000000e+00 : f32
    %58 = vector.broadcast %cst_22 : f32 to vector<8x128xf32>
    %59 = arith.cmpf olt, %29, %58 : vector<8x128xf32>
    %cst_23 = arith.constant 0.000000e+00 : f32
    %60 = vector.broadcast %cst_23 : f32 to vector<8x128xf32>
    %61 = arith.subf %60, %57 : vector<8x128xf32>
    %62 = arith.select %59, %61, %57 : vector<8x128xi1>, vector<8x128xf32>
    %cst_24 = arith.constant 5.000000e-01 : f32
    %63 = vector.broadcast %cst_24 : f32 to vector<8x128xf32>
    %64 = arith.mulf %63, %27 : vector<8x128xf32>
    %cst_25 = arith.constant 1.000000e+00 : f32
    %65 = vector.broadcast %cst_25 : f32 to vector<8x128xf32>
    %66 = arith.addf %65, %62 : vector<8x128xf32>
    %67 = arith.mulf %64, %66 : vector<8x128xf32>
    %68 = arith.truncf %67 : vector<8x128xf32> to vector<8x128xbf16>
    %c0_26 = arith.constant 0 : index
    %c0_27 = arith.constant 0 : index
    %69 = vector.load %arg4[%c0_26, %c0_27] : memref<128x128xbf16, #tpu.memory_space<vmem>>, vector<128x128xbf16>
    %cst_28 = arith.constant dense<0.000000e+00> : vector<8x128xf32>
    %70 = tpu.matmul %68, %69, %cst_28 {dimension_numbers = #tpu.dot_dimension_numbers<[1], [0], [0], [1], [0, 0, 1, 1], [], []>} : vector<8x128xbf16>, vector<128x128xbf16>, vector<8x128xf32> -> vector<8x128xf32>
    %c0_29 = arith.constant 0 : index
    %c0_30 = arith.constant 0 : index
    %71 = vector.load %arg5[%c0_29, %c0_30] : memref<1x128xf32, #tpu.memory_space<vmem>>, vector<1x128xf32>
    %72 = vector.broadcast %71 : vector<1x128xf32> to vector<8x128xf32>
    %73 = arith.addf %70, %72 : vector<8x128xf32>
    %cst_31 = arith.constant dense<0.000000e+00> : vector<8xf32>
    %74 = vector.multi_reduction <add>, %73, %cst_31 [1] : vector<8x128xf32> to vector<8xf32>
    %75 = vector.shape_cast %74 : vector<8xf32> to vector<8x1xf32>
    %cst_32 = arith.constant 1.562500e-02 : f32
    %76 = vector.broadcast %cst_32 : f32 to vector<8x1xf32>
    %77 = arith.mulf %75, %76 : vector<8x1xf32>
    %78 = arith.mulf %73, %73 : vector<8x128xf32>
    %cst_33 = arith.constant dense<0.000000e+00> : vector<8xf32>
    %79 = vector.multi_reduction <add>, %78, %cst_33 [1] : vector<8x128xf32> to vector<8xf32>
    %80 = vector.shape_cast %79 : vector<8xf32> to vector<8x1xf32>
    %cst_34 = arith.constant 1.562500e-02 : f32
    %81 = vector.broadcast %cst_34 : f32 to vector<8x1xf32>
    %82 = arith.mulf %80, %81 : vector<8x1xf32>
    %83 = arith.mulf %77, %77 : vector<8x1xf32>
    %84 = arith.subf %82, %83 : vector<8x1xf32>
    %cst_35 = arith.constant 0.000000e+00 : f32
    %85 = vector.broadcast %cst_35 : f32 to vector<8x1xf32>
    %86 = arith.maximumf %84, %85 : vector<8x1xf32>
    %cst_36 = arith.constant 9.99999974E-6 : f32
    %87 = vector.broadcast %cst_36 : f32 to vector<8x1xf32>
    %88 = arith.addf %86, %87 : vector<8x1xf32>
    %89 = math.rsqrt %88 : vector<8x1xf32>
    %90 = vector.broadcast %77 : vector<8x1xf32> to vector<8x128xf32>
    %91 = arith.subf %73, %90 : vector<8x128xf32>
    %92 = vector.broadcast %89 : vector<8x1xf32> to vector<8x128xf32>
    %93 = arith.mulf %91, %92 : vector<8x128xf32>
    %c0_37 = arith.constant 0 : index
    %c0_38 = arith.constant 0 : index
    %94 = vector.load %arg6[%c0_37, %c0_38] : memref<1x128xf32, #tpu.memory_space<vmem>>, vector<1x128xf32>
    %95 = vector.broadcast %94 : vector<1x128xf32> to vector<8x128xf32>
    %96 = arith.mulf %93, %95 : vector<8x128xf32>
    %c0_39 = arith.constant 0 : index
    %c0_40 = arith.constant 0 : index
    %97 = vector.load %arg7[%c0_39, %c0_40] : memref<1x128xf32, #tpu.memory_space<vmem>>, vector<1x128xf32>
    %98 = vector.broadcast %97 : vector<1x128xf32> to vector<8x128xf32>
    %99 = arith.addf %96, %98 : vector<8x128xf32>
    %c0_41 = arith.constant 0 : index
    %c0_42 = arith.constant 0 : index
    %100 = vector.load %arg8[%c0_41, %c0_42] : memref<8x128xf32, #tpu.memory_space<vmem>>, vector<8x128xf32>
    tpu.vector_store %arg8[%c0_41, %c0_42], %99 {strides = array<i32>} : memref<8x128xf32, #tpu.memory_space<vmem>>, vector<8x128xf32>,
    return
  }
  func.func @transform_0(%arg0: i32) -> (i32, i32) {
    %c0_i32 = arith.constant 0 : i32
    %c0_i32_0 = arith.constant 0 : i32
    return %arg0, %c0_i32 : i32, i32
  }
  func.func @transform_1(%arg0: i32) -> (i32, i32) {
    %c0_i32 = arith.constant 0 : i32
    %c0_i32_0 = arith.constant 0 : i32
    %c0_i32_1 = arith.constant 0 : i32
    return %c0_i32, %c0_i32_0 : i32, i32
  }
  func.func @transform_2(%arg0: i32) -> (i32, i32) {
    %c0_i32 = arith.constant 0 : i32
    %c0_i32_0 = arith.constant 0 : i32
    %c0_i32_1 = arith.constant 0 : i32
    return %c0_i32, %c0_i32_0 : i32, i32
  }
  func.func @transform_3(%arg0: i32) -> (i32, i32) {
    %c0_i32 = arith.constant 0 : i32
    %c0_i32_0 = arith.constant 0 : i32
    %c0_i32_1 = arith.constant 0 : i32
    return %c0_i32, %c0_i32_0 : i32, i32
  }
  func.func @transform_4(%arg0: i32) -> (i32, i32) {
    %c0_i32 = arith.constant 0 : i32
    %c0_i32_0 = arith.constant 0 : i32
    %c0_i32_1 = arith.constant 0 : i32
    return %c0_i32, %c0_i32_0 : i32, i32
  }
  func.func @transform_5(%arg0: i32) -> (i32, i32) {
    %c0_i32 = arith.constant 0 : i32
    %c0_i32_0 = arith.constant 0 : i32
    %c0_i32_1 = arith.constant 0 : i32
    return %c0_i32, %c0_i32_0 : i32, i32
  }
  func.func @transform_6(%arg0: i32) -> (i32, i32) {
    %c0_i32 = arith.constant 0 : i32
    %c0_i32_0 = arith.constant 0 : i32
    %c0_i32_1 = arith.constant 0 : i32
    return %c0_i32, %c0_i32_0 : i32, i32
  }
  func.func @transform_7(%arg0: i32) -> (i32, i32) {
    %c0_i32 = arith.constant 0 : i32
    %c0_i32_0 = arith.constant 0 : i32
    return %arg0, %c0_i32 : i32, i32
  }
}

</mosaic_0001>

<llo_original>
// kernel: tpu_custom_call.1
$region0: #{tpu_custom_call.1}
  #allocation0 [shape = 'u32[]', space=smem, size = 0x4, offset = 0x4, fixed_abs, tag = 'smem constant byte address 0x4 - core index']
  #allocation1 [shape = 'u32[72,128]{1,0:T(1,128)}', space=vmem, size = 0x9000, scoped, tag = 'internal scratch']
  %s0 = inlined_call_operand.hbm [shape: bf16[16,128], index: 0, kind: input, shape index: {}]
  %s1 = inlined_call_operand.hbm [shape: bf16[128,128], index: 1, kind: input, shape index: {}]
  %s2 = inlined_call_operand.vmem [shape: f32[1,128], index: 2, kind: input, shape index: {}]
  %s3 = inlined_call_operand.hbm [shape: bf16[128,128], index: 3, kind: input, shape index: {}]
  %s4 = inlined_call_operand.vmem [shape: f32[1,128], index: 4, kind: input, shape index: {}]
  %s5 = inlined_call_operand.vmem [shape: f32[1,128], index: 5, kind: input, shape index: {}]
  %s6 = inlined_call_operand.vmem [shape: f32[1,128], index: 6, kind: input, shape index: {}]
  %s7 = inlined_call_operand.hbm [shape: f32[16,128], index: 7, kind: output, shape index: {}]
  %s8 = sld [smem:[#allocation0]]
  $region73: #{tpu_custom_call.1} parent=0
    _
  %s10 = ssub.s32 1, %s8
  %s11 = scalar_select 0, %s10, %s8
  $region1: #{tpu_custom_call.1} parent=0
    #allocation2 [shape = 'u8[4096]{0}', space=vmem, size = 0x1000, scoped, tag = 'input window, operand 0']
    #allocation3 [shape = 's32[2]{0}', space=sflag, size = 0x8, scoped, tag = 'scoped memory for tpu_custom_call.1']
    #allocation4 [shape = 's32[2]{0}', space=sflag, size = 0x8, scoped, tag = 'scoped memory for tpu_custom_call.1']
    #allocation5 [shape = 'u8[32768]{0}', space=vmem, size = 0x8000, scoped, tag = 'input window, operand 1, single buffered']
    #allocation6 [shape = 's32[1]{0}', space=sflag, size = 0x4, scoped, tag = 'scoped memory for tpu_custom_call.1']
    #allocation7 [shape = 'u8[32768]{0}', space=vmem, size = 0x8000, scoped, tag = 'input window, operand 3, single buffered']
    #allocation8 [shape = 'u8[8192]{0}', space=vmem, size = 0x2000, scoped, tag = 'output window, operand 0']
    %12 = vsyncpa [#allocation3], 0
    %s13 = scalar_lea.sflag [#allocation3], 1
    %14 = vsyncpa %s13, 0
    %15 = vsyncpa [#allocation6], 0
    %16 = vsyncpa [#allocation4], 0
    %s17 = scalar_lea.sflag [#allocation4], 1
    %18 = vsyncpa %s17, 0
    loop: start=0, step=1, limit=4
    $region2: #{tpu_custom_call.1} parent=1 // loop_pre_header
      _
    $region3: #{tpu_custom_call.1} parent=1 // loop_header
      %s20 = sphi 0, %s24
      %p21 = scmp.ge.s32.totalorder %s20, 4
      %s30 = sphi 0, %s32
      %s33 = sphi 0, %s30
      %s34 = sphi 0, %s33
      %s50 = sphi 0, %s34
      %s54 = sphi 0, %s54
      %s56 = sphi 0, %s54
      %s57 = sphi 0, %s56
      %s71 = sphi 0, %s57
      %s75 = sphi 0, %s75
      %s77 = sphi 0, %s75
      %s78 = sphi 0, %s77
      %s92 = sphi 0, %s78
      %s96 = sphi 0, %s96
      %s98 = sphi 0, %s96
      %s99 = sphi 0, %s98
      %s113 = sphi 0, %s99
      %s117 = sphi 0, %s117
      %s119 = sphi 0, %s117
      %s120 = sphi 0, %s119
      %s134 = sphi 0, %s120
      %s138 = sphi 0, %s138
      %s140 = sphi 0, %s138
      %s141 = sphi 0, %s140
      %s155 = sphi 0, %s141
      %s159 = sphi 0, %s159
      %s161 = sphi 0, %s159
      %s162 = sphi 0, %s161
      %s176 = sphi 0, %s162
      %s182 = sphi 0, %s184
      %s185 = sphi 0, %s182
      %s186 = sphi 0, %s185
      %s202 = sphi 0, %s186
    $region4: #{tpu_custom_call.1} parent=1 // loop_header_branch
      %23 = sbr.rel (%p21) target = $region8
    $region5: #{tpu_custom_call.1} parent=1 // loop_body
      %s25 = ssub.s32 %s20, 1
      %s26 = ssub.s32 %s20, 2
      %s27 = sadd.s32 %s20, 1
      %s28 = ssub.s32 %s20, %s27
      %p29 = scmp.eq.s32.totalorder %s28, 0
      %s31 = sadd.s32 %s30, 1
      %s32 = scalar_select %p29, %s30, %s31
      %p35 = pneg %p29
      %p36 = scmp.eq.s32.totalorder %s20, 1
      %p37 = por %p35, %p36
      %p38 = scmp.ne.s32.totalorder %s30, %s33
      %p39 = scmp.eq.s32.totalorder %s20, 0
      %p40 = por %p38, %p39
      %p41 = scmp.ne.s32.totalorder %s30, %s33
      %p42 = scmp.eq.s32.totalorder %s25, 1
      %p43 = por %p41, %p42
      %p44 = scmp.ne.s32.totalorder %s33, %s34
      %p45 = scmp.eq.s32.totalorder %s25, 0
      %p46 = por %p44, %p45
      %p47 = scmp.ne.s32.totalorder %s33, %s34
      %p48 = scmp.eq.s32.totalorder %s26, 1
      %p49 = por %p47, %p48
      %p51 = scmp.ne.s32.totalorder %s34, %s50
      %p52 = scmp.eq.s32.totalorder %s26, 0
      %p53 = por %p51, %p52
      %s55 = sadd.s32 %s54, 1
      %p58 = scmp.eq.s32.totalorder %s20, 1
      %p59 = scmp.ne.s32.totalorder %s54, %s56
      %p60 = scmp.eq.s32.totalorder %s20, 0
      %p61 = por %p59, %p60
      %p62 = scmp.ne.s32.totalorder %s54, %s56
      %p63 = scmp.eq.s32.totalorder %s25, 1
      %p64 = por %p62, %p63
      %p65 = scmp.ne.s32.totalorder %s56, %s57
      %p66 = scmp.eq.s32.totalorder %s25, 0
      %p67 = por %p65, %p66
      %p68 = scmp.ne.s32.totalorder %s56, %s57
      %p69 = scmp.eq.s32.totalorder %s26, 1
      %p70 = por %p68, %p69
      %p72 = scmp.ne.s32.totalorder %s57, %s71
      %p73 = scmp.eq.s32.totalorder %s26, 0
      %p74 = por %p72, %p73
      %s76 = sadd.s32 %s75, 1
      %p79 = scmp.eq.s32.totalorder %s20, 1
      %p80 = scmp.ne.s32.totalorder %s75, %s77
      %p81 = scmp.eq.s32.totalorder %s20, 0
      %p82 = por %p80, %p81
      %p83 = scmp.ne.s32.totalorder %s75, %s77
      %p84 = scmp.eq.s32.totalorder %s25, 1
      %p85 = por %p83, %p84
      %p86 = scmp.ne.s32.totalorder %s77, %s78
      %p87 = scmp.eq.s32.totalorder %s25, 0
      %p88 = por %p86, %p87
      %p89 = scmp.ne.s32.totalorder %s77, %s78
      %p90 = scmp.eq.s32.totalorder %s26, 1
      %p91 = por %p89, %p90
      %p93 = scmp.ne.s32.totalorder %s78, %s92
      %p94 = scmp.eq.s32.totalorder %s26, 0
      %p95 = por %p93, %p94
      %s97 = sadd.s32 %s96, 1
      %p100 = scmp.eq.s32.totalorder %s20, 1
      %p101 = scmp.ne.s32.totalorder %s96, %s98
      %p102 = scmp.eq.s32.totalorder %s20, 0
      %p103 = por %p101, %p102
      %p104 = scmp.ne.s32.totalorder %s96, %s98
      %p105 = scmp.eq.s32.totalorder %s25, 1
      %p106 = por %p104, %p105
      %p107 = scmp.ne.s32.totalorder %s98, %s99
      %p108 = scmp.eq.s32.totalorder %s25, 0
      %p109 = por %p107, %p108
      %p110 = scmp.ne.s32.totalorder %s98, %s99
      %p111 = scmp.eq.s32.totalorder %s26, 1
      %p112 = por %p110, %p111
      %p114 = scmp.ne.s32.totalorder %s99, %s113
      %p115 = scmp.eq.s32.totalorder %s26, 0
      %p116 = por %p114, %p115
      %s118 = sadd.s32 %s117, 1
      %p121 = scmp.eq.s32.totalorder %s20, 1
      %p122 = scmp.ne.s32.totalorder %s117, %s119
      %p123 = scmp.eq.s32.totalorder %s20, 0
      %p124 = por %p122, %p123
      %p125 = scmp.ne.s32.totalorder %s117, %s119
      %p126 = scmp.eq.s32.totalorder %s25, 1
      %p127 = por %p125, %p126
      %p128 = scmp.ne.s32.totalorder %s119, %s120
      %p129 = scmp.eq.s32.totalorder %s25, 0
      %p130 = por %p128, %p129
      %p131 = scmp.ne.s32.totalorder %s119, %s120
      %p132 = scmp.eq.s32.totalorder %s26, 1
      %p133 = por %p131, %p132
      %p135 = scmp.ne.s32.totalorder %s120, %s134
      %p136 = scmp.eq.s32.totalorder %s26, 0
      %p137 = por %p135, %p136
      %s139 = sadd.s32 %s138, 1
      %p142 = scmp.eq.s32.totalorder %s20, 1
      %p143 = scmp.ne.s32.totalorder %s138, %s140
      %p144 = scmp.eq.s32.totalorder %s20, 0
      %p145 = por %p143, %p144
      %p146 = scmp.ne.s32.totalorder %s138, %s140
      %p147 = scmp.eq.s32.totalorder %s25, 1
      %p148 = por %p146, %p147
      %p149 = scmp.ne.s32.totalorder %s140, %s141
      %p150 = scmp.eq.s32.totalorder %s25, 0
      %p151 = por %p149, %p150
      %p152 = scmp.ne.s32.totalorder %s140, %s141
      %p153 = scmp.eq.s32.totalorder %s26, 1
      %p154 = por %p152, %p153
      %p156 = scmp.ne.s32.totalorder %s141, %s155
      %p157 = scmp.eq.s32.totalorder %s26, 0
      %p158 = por %p156, %p157
      %s160 = sadd.s32 %s159, 1
      %p163 = scmp.eq.s32.totalorder %s20, 1
      %p164 = scmp.ne.s32.totalorder %s159, %s161
      %p165 = scmp.eq.s32.totalorder %s20, 0
      %p166 = por %p164, %p165
      %p167 = scmp.ne.s32.totalorder %s159, %s161
      %p168 = scmp.eq.s32.totalorder %s25, 1
      %p169 = por %p167, %p168
      %p170 = scmp.ne.s32.totalorder %s161, %s162
      %p171 = scmp.eq.s32.totalorder %s25, 0
      %p172 = por %p170, %p171
      %p173 = scmp.ne.s32.totalorder %s161, %s162
      %p174 = scmp.eq.s32.totalorder %s26, 1
      %p175 = por %p173, %p174
      %p177 = scmp.ne.s32.totalorder %s162, %s176
      %p178 = scmp.eq.s32.totalorder %s26, 0
      %p179 = por %p177, %p178
      %s180 = ssub.s32 %s20, %s27
      %p181 = scmp.eq.s32.totalorder %s180, 0
      %s183 = sadd.s32 %s182, 1
      %s184 = scalar_select %p181, %s182, %s183
      %p187 = pneg %p181
      %p188 = scmp.eq.s32.totalorder %s20, 1
      %p189 = por %p187, %p188
      %p190 = scmp.ne.s32.totalorder %s182, %s185
      %p191 = scmp.eq.s32.totalorder %s20, 0
      %p192 = por %p190, %p191
      %p193 = scmp.ne.s32.totalorder %s182, %s185
      %p194 = scmp.eq.s32.totalorder %s25, 1
      %p195 = por %p193, %p194
      %p196 = scmp.ne.s32.totalorder %s185, %s186
      %p197 = scmp.eq.s32.totalorder %s25, 0
      %p198 = por %p196, %p197
      %p199 = scmp.ne.s32.totalorder %s185, %s186
      %p200 = scmp.eq.s32.totalorder %s26, 1
      %p201 = por %p199, %p200
      %p203 = scmp.ne.s32.totalorder %s186, %s202
      %p204 = scmp.eq.s32.totalorder %s26, 0
      %p205 = por %p203, %p204
      %p206 = scmp.le.s32.totalorder 1, %s20
      %p207 = scmp.lt.s32.totalorder %s20, 3
      %p208 = pnand %p206, %p207
      %p209 = pneg %p208
      // Predicated region
      $region9: #{tpu_custom_call.1} parent=5 // pred_check
        _
      $region10: #{tpu_custom_call.1} parent=5 // pred_check_branch
        %211 = sbr.rel (%p208) target = $region12
      $region11: #{tpu_custom_call.1} parent=5 // pred_region
        %s212 = ssub.s32 %s20, 1
        // Predicated region
        $region13: #{tpu_custom_call.1} parent=11 // pred_check
          %p213 = pneg %p67
        $region14: #{tpu_custom_call.1} parent=11 // pred_check_branch
          %215 = sbr.rel (%p213) target = $region16
        $region15: #{tpu_custom_call.1} parent=11 // pred_region
          %217 = vsyncadd [#allocation6], 0
          %s218 = sshll.u32 %s1, 4
          %s219 = int_to_ptr.hbm [resolvable:$true] %s218
          %s220 = sshll.u32 [#allocation5], 4
          %s221 = int_to_ptr.vmem [resolvable:$true] %s220
          %226 = dma.hbm_to_vmem [thread:$0]  %s219, 1024, %s221, [#allocation6], 64, 64, 4
        $region16: #{tpu_custom_call.1} parent=11 // pred_fallthru
          _
        // Predicated region
        $region17: #{tpu_custom_call.1} parent=11 // pred_check
          %p227 = pneg %p88
        $region18: #{tpu_custom_call.1} parent=11 // pred_check_branch
          %229 = sbr.rel (%p227) target = $region20
        $region19: #{tpu_custom_call.1} parent=11 // pred_region
          _
        $region20: #{tpu_custom_call.1} parent=11 // pred_fallthru
          _
        // Predicated region
        $region21: #{tpu_custom_call.1} parent=11 // pred_check
          %p230 = pneg %p109
        $region22: #{tpu_custom_call.1} parent=11 // pred_check_branch
          %232 = sbr.rel (%p230) target = $region24
        $region23: #{tpu_custom_call.1} parent=11 // pred_region
          %234 = vsyncadd [#allocation6], 0
          %s235 = sshll.u32 %s3, 4
          %s236 = int_to_ptr.hbm [resolvable:$true] %s235
          %s237 = sshll.u32 [#allocation7], 4
          %s238 = int_to_ptr.vmem [resolvable:$true] %s237
          %243 = dma.hbm_to_vmem [thread:$0]  %s236, 1024, %s238, [#allocation6], 64, 64, 4
        $region24: #{tpu_custom_call.1} parent=11 // pred_fallthru
          _
        // Predicated region
        $region25: #{tpu_custom_call.1} parent=11 // pred_check
          %p244 = pneg %p130
        $region26: #{tpu_custom_call.1} parent=11 // pred_check_branch
          %246 = sbr.rel (%p244) target = $region28
        $region27: #{tpu_custom_call.1} parent=11 // pred_region
          _
        $region28: #{tpu_custom_call.1} parent=11 // pred_fallthru
          _
        // Predicated region
        $region29: #{tpu_custom_call.1} parent=11 // pred_check
          %p247 = pneg %p151
        $region30: #{tpu_custom_call.1} parent=11 // pred_check_branch
          %249 = sbr.rel (%p247) target = $region32
        $region31: #{tpu_custom_call.1} parent=11 // pred_region
          _
        $region32: #{tpu_custom_call.1} parent=11 // pred_fallthru
          _
        // Predicated region
        $region33: #{tpu_custom_call.1} parent=11 // pred_check
          %p250 = pneg %p172
        $region34: #{tpu_custom_call.1} parent=11 // pred_check_branch
          %252 = sbr.rel (%p250) target = $region36
        $region35: #{tpu_custom_call.1} parent=11 // pred_region
          _
        $region36: #{tpu_custom_call.1} parent=11 // pred_fallthru
          _
      $region12: #{tpu_custom_call.1} parent=5 // pred_fallthru
        _
      %p253 = scmp.lt.s32.totalorder %s20, 2
      // Predicated region
      $region37: #{tpu_custom_call.1} parent=5 // pred_check
        %p254 = pneg %p253
      $region38: #{tpu_custom_call.1} parent=5 // pred_check_branch
        %256 = sbr.rel (%p254) target = $region40
      $region39: #{tpu_custom_call.1} parent=5 // pred_region
        // Predicated region
        $region41: #{tpu_custom_call.1} parent=39 // pred_check
          %p257 = pneg %p40
        $region42: #{tpu_custom_call.1} parent=39 // pred_check_branch
          %259 = sbr.rel (%p257) target = $region44
        $region43: #{tpu_custom_call.1} parent=39 // pred_region
          %s260 = sand.u32 %s30, 1
          %s261 = scalar_lea.sflag [#allocation3], %s260
          %s262 = sand.u32 %s30, 1
          %s263 = smul.addr %s262, 4
          %s264 = scalar_lea.vmem [#allocation2], %s263
          %266 = vsyncadd %s261, 0
          %s267 = smul.addr %s20, 4
          %s268 = scalar_lea.hbm %s0, %s267
          %s270 = sshll.u32 %s268, 4
          %s271 = int_to_ptr.hbm [resolvable:$true] %s270
          %s272 = sshll.u32 %s264, 4
          %s273 = int_to_ptr.vmem [resolvable:$true] %s272
          %275 = dma.hbm_to_vmem [thread:$0]  %s271, 64, %s273, %s261
        $region44: #{tpu_custom_call.1} parent=39 // pred_fallthru
          _
      $region40: #{tpu_custom_call.1} parent=5 // pred_fallthru
        _
      %p276 = scmp.le.s32.totalorder 1, %s20
      %p277 = scmp.lt.s32.totalorder %s20, 3
      %p278 = pnand %p276, %p277
      %p279 = pneg %p278
      // Predicated region
      $region45: #{tpu_custom_call.1} parent=5 // pred_check
        _
      $region46: #{tpu_custom_call.1} parent=5 // pred_check_branch
        %281 = sbr.rel (%p278) target = $region48
      $region47: #{tpu_custom_call.1} parent=5 // pred_region
        %s282 = ssub.s32 %s20, 1
        %s283 = sand.u32 %s33, 1
        %s284 = scalar_lea.sflag [#allocation3], %s283
        %s285 = sand.u32 %s33, 1
        %s286 = smul.addr %s285, 4
        %s287 = scalar_lea.vmem [#allocation2], %s286
        // Predicated region
        $region49: #{tpu_custom_call.1} parent=47 // pred_check
          %p288 = pneg %p46
        $region50: #{tpu_custom_call.1} parent=47 // pred_check_branch
          %290 = sbr.rel (%p288) target = $region52
        $region51: #{tpu_custom_call.1} parent=47 // pred_region
          %292 = dma.done %s284, 64
        $region52: #{tpu_custom_call.1} parent=47 // pred_fallthru
          _
        // Predicated region
        $region53: #{tpu_custom_call.1} parent=47 // pred_check
          %p293 = pneg %p67
        $region54: #{tpu_custom_call.1} parent=47 // pred_check_branch
          %295 = sbr.rel (%p293) target = $region56
        $region55: #{tpu_custom_call.1} parent=47 // pred_region
          %297 = dma.done [#allocation6], 1024
        $region56: #{tpu_custom_call.1} parent=47 // pred_fallthru
          _
        // Predicated region
        $region57: #{tpu_custom_call.1} parent=47 // pred_check
          %p298 = pneg %p109
        $region58: #{tpu_custom_call.1} parent=47 // pred_check_branch
          %300 = sbr.rel (%p298) target = $region60
        $region59: #{tpu_custom_call.1} parent=47 // pred_region
          %302 = dma.done [#allocation6], 1024
        $region60: #{tpu_custom_call.1} parent=47 // pred_fallthru
          _
        %s303 = sand.u32 %s33, 1
        %s304 = scalar_lea.sflag [#allocation3], %s303
        %s305 = sand.u32 %s33, 1
        %s306 = smul.addr %s305, 4
        %s307 = scalar_lea.vmem [#allocation2], %s306
        %p308 = pneg %p46
        %p309 = pneg %p43
        %p310 = pneg %p67
        %p311 = pneg %p64
        %p312 = pneg %p88
        %p313 = pneg %p85
        %p314 = pneg %p109
        %p315 = pneg %p106
        %p316 = pneg %p130
        %p317 = pneg %p127
        %p318 = pneg %p151
        %p319 = pneg %p148
        %p320 = pneg %p172
        %p321 = pneg %p169
        %p322 = pneg %p198
        %p323 = pneg %p195
        %s324 = sand.u32 %s185, 1
        %s325 = scalar_lea.sflag [#allocation4], %s324
        %s326 = sand.u32 %s185, 1
        %s327 = smul.addr %s326, 8
        %s328 = scalar_lea.vmem [#allocation8], %s327
        %v329 = vld [vmem:[%s287] sm:$0xf]
        %v330 = vunpack.c.l.bf16 %v329
        %331 = vadd.xlane.f32.xlu0 %v330
        %v332 = vpop.xlane.xlu0 %331
        %v333 = vmul.f32 %v332, 0.03125
        %v334 = vmul.f32 %v330, %v330
        %335 = vadd.xlane.f32.xlu0 %v334
        %v336 = vpop.xlane.xlu0 %335
        %v337 = vmul.f32 %v336, 0.03125
        %v338 = vmul.f32 %v333, %v333
        %v339 = vsub.f32 %v337, %v338
        %v340 = vmax.f32 %v339, 0.0
        %v341 = vadd.f32 %v340, 1e-05
        %v342 = vrsqrt.pop %v341
        %v343 = vmul.f32 %v342, %v341
        %v344 = vmul.f32 %v343, %v342
        %v345 = vmul.f32 0.5, %v344
        %v346 = vsub.f32 1.5, %v345
        %v347 = vmul.f32 %v342, %v346
        %vm348 = vweird.f32 %v341
        %vm349 = vweird.f32 %v342
        %vm350 = vmor %vm348, %vm349
        %v351 = vsel %vm350, %v342, %v347
        %v352 = vsub.f32 %v330, %v333
        %v353 = vmul.f32 %v352, %v351
        %v354 = vpack.c.bf16 %v353, %v353
        %v355 = vld [vmem:[#allocation5] sm:$0xf]
        %v356 = vld [vmem:[#allocation5 + $0x4] sm:$0xf]
        %v357 = vld [vmem:[#allocation5 + $0x8] sm:$0xf]
        %v358 = vld [vmem:[#allocation5 + $0xc] sm:$0xf]
        %v359 = vld [vmem:[#allocation5 + $0x10] sm:$0xf]
        %v360 = vld [vmem:[#allocation5 + $0x14] sm:$0xf]
        %v361 = vld [vmem:[#allocation5 + $0x18] sm:$0xf]
        %v362 = vld [vmem:[#allocation5 + $0x1c] sm:$0xf]
        %v363 = vld [vmem:[#allocation5 + $0x20] sm:$0xf]
        %v364 = vld [vmem:[#allocation5 + $0x24] sm:$0xf]
        %v365 = vld [vmem:[#allocation5 + $0x28] sm:$0xf]
        %v366 = vld [vmem:[#allocation5 + $0x2c] sm:$0xf]
        %v367 = vld [vmem:[#allocation5 + $0x30] sm:$0xf]
        %v368 = vld [vmem:[#allocation5 + $0x34] sm:$0xf]
        %v369 = vld [vmem:[#allocation5 + $0x38] sm:$0xf]
        %v370 = vld [vmem:[#allocation5 + $0x3c] sm:$0xf]
        %v371 = vld [vmem:[%s2] sm:$0x1]
        %v373 = vperm.slane %v371, 0
        %v391 = vunpack.c.l.b16 %v355
        %v392 = vunpack.c.l.b16 %v356
        %v393 = vunpack.c.l.b16 %v357
        %v394 = vunpack.c.l.b16 %v358
        %v395 = vunpack.c.l.b16 %v359
        %v396 = vunpack.c.l.b16 %v360
        %v397 = vunpack.c.l.b16 %v361
        %v398 = vunpack.c.l.b16 %v362
        %v399 = vunpack.c.l.b16 %v363
        %v400 = vunpack.c.l.b16 %v364
        %v401 = vunpack.c.l.b16 %v365
        %v402 = vunpack.c.l.b16 %v366
        %v403 = vunpack.c.l.b16 %v367
        %v404 = vunpack.c.l.b16 %v368
        %v405 = vunpack.c.l.b16 %v369
        %v406 = vunpack.c.l.b16 %v370
        %v407 = vpack.c.b16 %v392, %v391
        %v408 = vpack.c.b16 %v394, %v393
        %v409 = vpack.c.b16 %v396, %v395
        %v410 = vpack.c.b16 %v398, %v397
        %v411 = vpack.c.b16 %v400, %v399
        %v412 = vpack.c.b16 %v402, %v401
        %v413 = vpack.c.b16 %v404, %v403
        %v414 = vpack.c.b16 %v406, %v405
        %423 = vmatpush.bf16.msra.mxu0 %v414
        %424 = vmatpush.bf16.msra.mxu0 %v413
        %425 = vmatpush.bf16.msra.mxu0 %v412
        %426 = vmatpush.bf16.msra.mxu0 %v411
        %427 = vmatpush.bf16.msra.mxu0 %v410
        %428 = vmatpush.bf16.msra.mxu0 %v409
        %429 = vmatpush.bf16.msra.mxu0 %v408
        %430 = vmatpush.bf16.msra.mxu0 %v407
        %431 = vmatmul.bf16.gmra.mxu0 %v354
        %v432 = vpop.f32.mrf.mxu0
        %v433 = vadd.f32 %v373, %v432
        %v434 = vpop.f32.mrf.mxu0
        %435 = vdwg.mxu0
        %v436 = vmul.f32 %v433, 0.70710677
        %v437 = vand.u32 2147483647, %v436
        %v438 = vmul.f32 %v437, 0.3275911
        %v439 = vadd.f32 %v438, 1.0
        %v440 = vrcp.pop %v439
        %v441 = vmul.f32 %v439, %v440
        %v442 = vsub.f32 1.0, %v441
        %v443 = vmul.f32 %v440, %v442
        %v444 = vadd.f32 %v440, %v443
        %vm445 = vweird.f32 %v439
        %vm446 = vweird.f32 %v440
        %vm447 = vmor %vm445, %vm446
        %v448 = vsel %vm447, %v440, %v444
        %v449 = vand.u32 2147483647, %v439
        %vm450 = vcmp.eq.f32.partialorder %v449, 8.507059e+37
        %v451 = vand.u32 %v439, 2147483648
        %v452 = vor.u32 1.1754944e-38, %v451
        %v453 = vsel %vm450, %v452, %v448
        %v454 = vmul.f32 1.0, %v453
        %v455 = vmul.f32 %v454, 1.0614054
        %v456 = vadd.f32 %v455, -1.4531521
        %v457 = vmul.f32 %v454, %v456
        %v458 = vadd.f32 %v457, 1.4214138
        %v459 = vmul.f32 %v454, %v458
        %v460 = vadd.f32 %v459, -0.28449672
        %v461 = vmul.f32 %v454, %v460
        %v462 = vadd.f32 %v461, 0.2548296
        %v463 = vmul.f32 %v454, %v462
        %v464 = vsub.f32 0.0, %v437
        %v465 = vmul.f32 %v464, %v437
        %v466 = vmul.f32 %v465, 1.442695
        %v467 = vpow.pop %v466
        %v468 = vmul.f32 %v463, %v467
        %v469 = vsub.f32 1.0, %v468
        %vm470 = vcmp.lt.f32.partialorder %v436, 0.0
        %v471 = vsub.f32 0.0, %v469
        %v472 = vsel %vm470, %v471, %v469
        %v473 = vmul.f32 %v433, 0.5
        %v474 = vadd.f32 %v472, 1.0
        %v475 = vmul.f32 %v473, %v474
        %v476 = vpack.c.bf16 %v475, %v475
        %v477 = vld [vmem:[#allocation7] sm:$0xf]
        %v478 = vld [vmem:[#allocation7 + $0x4] sm:$0xf]
        %v479 = vld [vmem:[#allocation7 + $0x8] sm:$0xf]
        %v480 = vld [vmem:[#allocation7 + $0xc] sm:$0xf]
        %v481 = vld [vmem:[#allocation7 + $0x10] sm:$0xf]
        %v482 = vld [vmem:[#allocation7 + $0x14] sm:$0xf]
        %v483 = vld [vmem:[#allocation7 + $0x18] sm:$0xf]
        %v484 = vld [vmem:[#allocation7 + $0x1c] sm:$0xf]
        %v485 = vld [vmem:[#allocation7 + $0x20] sm:$0xf]
        %v486 = vld [vmem:[#allocation7 + $0x24] sm:$0xf]
        %v487 = vld [vmem:[#allocation7 + $0x28] sm:$0xf]
        %v488 = vld [vmem:[#allocation7 + $0x2c] sm:$0xf]
        %v489 = vld [vmem:[#allocation7 + $0x30] sm:$0xf]
        %v490 = vld [vmem:[#allocation7 + $0x34] sm:$0xf]
        %v491 = vld [vmem:[#allocation7 + $0x38] sm:$0xf]
        %v492 = vld [vmem:[#allocation7 + $0x3c] sm:$0xf]
        %v493 = vld [vmem:[%s4] sm:$0x1]
        %v495 = vperm.slane %v493, 0
        %v513 = vunpack.c.l.b16 %v477
        %v514 = vunpack.c.l.b16 %v478
        %v515 = vunpack.c.l.b16 %v479
        %v516 = vunpack.c.l.b16 %v480
        %v517 = vunpack.c.l.b16 %v481
        %v518 = vunpack.c.l.b16 %v482
        %v519 = vunpack.c.l.b16 %v483
        %v520 = vunpack.c.l.b16 %v484
        %v521 = vunpack.c.l.b16 %v485
        %v522 = vunpack.c.l.b16 %v486
        %v523 = vunpack.c.l.b16 %v487
        %v524 = vunpack.c.l.b16 %v488
        %v525 = vunpack.c.l.b16 %v489
        %v526 = vunpack.c.l.b16 %v490
        %v527 = vunpack.c.l.b16 %v491
        %v528 = vunpack.c.l.b16 %v492
        %v529 = vpack.c.b16 %v514, %v513
        %v530 = vpack.c.b16 %v516, %v515
        %v531 = vpack.c.b16 %v518, %v517
        %v532 = vpack.c.b16 %v520, %v519
        %v533 = vpack.c.b16 %v522, %v521
        %v534 = vpack.c.b16 %v524, %v523
        %v535 = vpack.c.b16 %v526, %v525
        %v536 = vpack.c.b16 %v528, %v527
        %545 = vmatpush.bf16.msra.mxu0 %v536
        %546 = vmatpush.bf16.msra.mxu0 %v535
        %547 = vmatpush.bf16.msra.mxu0 %v534
        %548 = vmatpush.bf16.msra.mxu0 %v533
        %549 = vmatpush.bf16.msra.mxu0 %v532
        %550 = vmatpush.bf16.msra.mxu0 %v531
        %551 = vmatpush.bf16.msra.mxu0 %v530
        %552 = vmatpush.bf16.msra.mxu0 %v529
        %553 = vmatmul.bf16.gmra.mxu0 %v476
        %v554 = vpop.f32.mrf.mxu0
        %v555 = vadd.f32 %v495, %v554
        %v556 = vpop.f32.mrf.mxu0
        %557 = vdwg.mxu0
        %558 = vadd.xlane.f32.xlu0 %v555
        %v559 = vpop.xlane.xlu0 %558
        %v560 = vmul.f32 %v559, 0.015625
        %v561 = vmul.f32 %v555, %v555
        %562 = vadd.xlane.f32.xlu0 %v561
        %v563 = vpop.xlane.xlu0 %562
        %v564 = vmul.f32 %v563, 0.015625
        %v565 = vmul.f32 %v560, %v560
        %v566 = vsub.f32 %v564, %v565
        %v567 = vmax.f32 %v566, 0.0
        %v568 = vadd.f32 %v567, 1e-05
        %v569 = vrsqrt.pop %v568
        %v570 = vmul.f32 %v569, %v568
        %v571 = vmul.f32 %v570, %v569
        %v572 = vmul.f32 0.5, %v571
        %v573 = vsub.f32 1.5, %v572
        %v574 = vmul.f32 %v569, %v573
        %vm575 = vweird.f32 %v568
        %vm576 = vweird.f32 %v569
        %vm577 = vmor %vm575, %vm576
        %v578 = vsel %vm577, %v569, %v574
        %v579 = vsub.f32 %v555, %v560
        %v580 = vmul.f32 %v579, %v578
        %v581 = vld [vmem:[%s5] sm:$0x1]
        %v583 = vperm.slane %v581, 0
        %v585 = vmul.f32 %v580, %v583
        %v586 = vld [vmem:[%s6] sm:$0x1]
        %v588 = vperm.slane %v586, 0
        %v590 = vadd.f32 %v585, %v588
        %591 = vst [vmem:[%s328] sm:$0xff] %v590
        %s592 = sand.u32 %s185, 1
        %s593 = scalar_lea.sflag [#allocation4], %s592
        %s594 = sand.u32 %s185, 1
        %s595 = smul.addr %s594, 8
        %s596 = scalar_lea.vmem [#allocation8], %s595
        // Predicated region
        $region61: #{tpu_custom_call.1} parent=47 // pred_check
          %p597 = pneg %p195
        $region62: #{tpu_custom_call.1} parent=47 // pred_check_branch
          %599 = sbr.rel (%p597) target = $region64
        $region63: #{tpu_custom_call.1} parent=47 // pred_region
          %601 = vsyncadd %s593, 0
          %s602 = smul.addr %s25, 8
          %s603 = scalar_lea.hbm %s7, %s602
          %s605 = sshll.u32 %s596, 4
          %s606 = int_to_ptr.vmem [resolvable:$true] %s605
          %s607 = sshll.u32 %s603, 4
          %s608 = int_to_ptr.hbm [resolvable:$true] %s607
          %610 = dma.vmem_to_hbm [thread:$0]  %s606, 128, %s608, %s593
        $region64: #{tpu_custom_call.1} parent=47 // pred_fallthru
          _
      $region48: #{tpu_custom_call.1} parent=5 // pred_fallthru
        _
      %p611 = scmp.le.s32.totalorder 2, %s20
      // Predicated region
      $region65: #{tpu_custom_call.1} parent=5 // pred_check
        %p612 = pneg %p611
      $region66: #{tpu_custom_call.1} parent=5 // pred_check_branch
        %614 = sbr.rel (%p612) target = $region68
      $region67: #{tpu_custom_call.1} parent=5 // pred_region
        %s615 = ssub.s32 %s20, 2
        // Predicated region
        $region69: #{tpu_custom_call.1} parent=67 // pred_check
          %p616 = pneg %p201
        $region70: #{tpu_custom_call.1} parent=67 // pred_check_branch
          %618 = sbr.rel (%p616) target = $region72
        $region71: #{tpu_custom_call.1} parent=67 // pred_region
          %s619 = sand.u32 %s186, 1
          %s620 = scalar_lea.sflag [#allocation4], %s619
          %s621 = sand.u32 %s186, 1
          %s622 = smul.addr %s621, 8
          %s623 = scalar_lea.vmem [#allocation8], %s622
          %625 = dma.done %s620, 128
        $region72: #{tpu_custom_call.1} parent=67 // pred_fallthru
          _
      $region68: #{tpu_custom_call.1} parent=5 // pred_fallthru
        _
    $region6: #{tpu_custom_call.1} parent=1 // loop_footer
      %s24 = sadd.s32 1, %s20
    $region7: #{tpu_custom_call.1} parent=1 // loop_footer_branch
      %19 = sbr.rel target = $region3
    $region8: #{tpu_custom_call.1} parent=1 // loop_exit
      _
    %626 = vsyncpa [#allocation3], 1
    %s627 = scalar_lea.sflag [#allocation3], 1
    %628 = vsyncpa %s627, 1
    %629 = vsyncpa [#allocation6], 1
    %630 = vsyncpa [#allocation4], 1
    %s631 = scalar_lea.sflag [#allocation4], 1
    %632 = vsyncpa %s631, 1

</llo_original>
